<compile_context>
chip_gen: v7x
topology: tpu7x:2x2x1
jax: 0.10.0
libtpu: 0.0.40
codegen_flags: <defaults>
</compile_context>

<pallas_src>
import functools
import math

import jax
import jax.numpy as jnp
from jax.experimental import pallas as pl
from jax.experimental.pallas import tpu as pltpu

_LANE = 128
_SUBLANE = 8


def _round_up(n: int, m: int) -> int:
    return ((n + m - 1) // m) * m


def _vmem_limit_bytes() -> int:
    """Scoped-VMEM limit: ~3/4 of physical, capped at 96 MiB.

    v5e/v6e have 128 MiB physical VMEM (default scoped limit is only 16/32 MiB),
    v7x has 64 MiB per TensorCore.  Fallback assumes the smallest (v7x).
    """
    cap = 64 * 1024 * 1024
    try:
        cap = int(pltpu.get_tpu_info().vmem_capacity_bytes)
    except Exception:
        pass
    return min(cap * 3 // 4, 96 * 1024 * 1024)


def _choose_row_tile(dp: int, in_bytes: int, out_bytes: int,
                     packed_rows: int, vmem_limit: int) -> int:
    """Largest sublane-aligned row tile whose double-buffered input+output tiles
    (plus f32 in-kernel temporaries) fit in ~half the scoped VMEM limit."""
    budget = vmem_limit // 2
    per_row = 2 * dp * in_bytes + 2 * dp * out_bytes + 4 * dp * 4  # 4*dp*4 = temp headroom
    tm = max(budget // per_row, _SUBLANE)
    tm = min(tm, 8192)                               # keep single DMAs bounded
    tm = min(tm, _round_up(packed_rows, _SUBLANE))   # never exceed (padded) data
    return max(_SUBLANE, (tm // _SUBLANE) * _SUBLANE)


def _rmsnorm_kernel(x_ref, scale_ref, o_ref, *, inner_dim: int):
    # x_ref:     (tm, Dp)  original dtype; Dp = pack * inner_dim (lane-dense)
    # scale_ref: (1,  Dp)  float32 parameter, tiled per packed segment
    # o_ref:     (tm, Dp)  output dtype (f32 for plain RMSNorm, v.dtype for QKNorm)
    x_dtype = x_ref.dtype
    x = x_ref[...].astype(jnp.float32)              # x.float()
    scale = scale_ref[...]                          # f32
    dp = x.shape[-1]
    num_seg = dp // inner_dim                       # static, small (1, 2 or 4)
    for p in range(num_seg):                        # static unroll over packed heads
        lo = p * inner_dim
        hi = lo + inner_dim
        xs = x[:, lo:hi]                                            # (tm, D)
        ms = jnp.mean(xs * xs, axis=-1, keepdims=True)              # mean(x**2, -1)
        rrms = jax.lax.rsqrt(ms + 1e-6)                             # rsqrt(... + 1e-6)
        ys = (xs * rrms).astype(x_dtype)                            # .to(x_dtype)
        out = ys.astype(jnp.float32) * scale[:, lo:hi]              # * f32 scale
        o_ref[:, lo:hi] = out.astype(o_ref.dtype)


def rmsnorm(x: jax.Array, scale: jax.Array, out_dtype=None) -> jax.Array:
    """RMSNorm over the last axis of `x` with learnable per-feature `scale`.

    out_dtype=None reproduces the PyTorch type promotion (always float32 output);
    QKNorm passes out_dtype=v.dtype to fuse the trailing `.to(v)` cast.
    """
    orig_shape = x.shape
    d = orig_shape[-1]
    if out_dtype is None:
        out_dtype = jnp.promote_types(x.dtype, jnp.float32)
    out_dtype = jnp.dtype(out_dtype)

    rows = math.prod(orig_shape[:-1]) if len(orig_shape) > 1 else 1

    # Lane packing for small head dims: pack `128 // d` consecutive rows into one
    # 128-lane row; the kernel reduces each d-wide segment independently.
    pack = _LANE // d if (d < _LANE and _LANE % d == 0) else 1
    dp = pack * d

    x2 = x.reshape(rows, d)
    scale_p = jnp.tile(scale.astype(jnp.float32).reshape(d), pack).reshape(1, dp)

    in_bytes = jnp.dtype(x.dtype).itemsize
    out_bytes = out_dtype.itemsize
    vmem_limit = _vmem_limit_bytes()
    packed_rows = _round_up(rows, pack) // pack
    tm = _choose_row_tile(dp, in_bytes, out_bytes, packed_rows, vmem_limit)

    # Pad rows so the packed row count is an exact multiple of the tile: keeps a
    # fixed, pipeline-friendly tile instead of one giant (possibly VMEM-busting)
    # block when rows isn't tile-aligned.  Zero rows normalize to zero (no NaNs).
    packed_rows_padded = _round_up(packed_rows, tm)
    rows_padded = packed_rows_padded * pack
    if rows_padded != rows:
        x2 = jnp.pad(x2, ((0, rows_padded - rows), (0, 0)))
    xp = x2.reshape(packed_rows_padded, dp)

    grid = (packed_rows_padded // tm,)
    kernel = functools.partial(_rmsnorm_kernel, inner_dim=d)

    cost = pl.CostEstimate(
        flops=int(6 * rows * d),
        transcendentals=int(rows),
        bytes_accessed=int(rows * d * (in_bytes + out_bytes) + d * 4),
    )

    out = pl.pallas_call(
        kernel,
        out_shape=jax.ShapeDtypeStruct((packed_rows_padded, dp), out_dtype),
        grid=grid,
        in_specs=[
            pl.BlockSpec((tm, dp), lambda i: (i, 0)),   # row tile of (packed) x
            pl.BlockSpec((1, dp), lambda i: (0, 0)),    # scale, same block every step
        ],
        out_specs=pl.BlockSpec((tm, dp), lambda i: (i, 0)),
        compiler_params=pltpu.CompilerParams(
            dimension_semantics=("parallel",),          # megacore-shard rows (v7x)
            vmem_limit_bytes=vmem_limit,
        ),
        cost_estimate=cost,
    )(xp, scale_p)

    out = out.reshape(rows_padded, d)[:rows]
    return out.reshape(orig_shape)


def qknorm(q: jax.Array, k: jax.Array, v: jax.Array,
           query_scale: jax.Array, key_scale: jax.Array):
    """QKNorm forward: (query_norm(q).to(v.dtype), key_norm(k).to(v.dtype))."""
    out_dtype = v.dtype   # the trailing `.to(v)` cast is fused into the kernel store
    q_out = rmsnorm(q, query_scale, out_dtype=out_dtype)
    k_out = rmsnorm(k, key_scale, out_dtype=out_dtype)
    return q_out, k_out


# ----------------------------- pure-JAX references -----------------------------

def rmsnorm_reference(x: jax.Array, scale: jax.Array) -> jax.Array:
    x_dtype = x.dtype
    xf = x.astype(jnp.float32)
    rrms = jax.lax.rsqrt(jnp.mean(xf * xf, axis=-1, keepdims=True) + 1e-6)
    return (xf * rrms).astype(x_dtype) * scale.astype(jnp.float32)


def qknorm_reference(q, k, v, query_scale, key_scale):
    return (rmsnorm_reference(q, query_scale).astype(v.dtype),
            rmsnorm_reference(k, key_scale).astype(v.dtype))


if __name__ == "__main__":
    key = jax.random.PRNGKey(0)
    kq, kk, kv = jax.random.split(key, 3)

    # QKNorm on attention heads: (batch=2, heads=4, seq=8, head_dim=32)
    B, H, S, D = 2, 4, 8, 32
    q = jax.random.normal(kq, (B, H, S, D), dtype=jnp.float32)
    k = jax.random.normal(kk, (B, H, S, D), dtype=jnp.float32)
    v = jax.random.normal(kv, (B, H, S, D), dtype=jnp.float32)
    q_scale = jnp.ones((D,), dtype=jnp.float32)   # nn.Parameter(torch.ones(dim))
    k_scale = jnp.ones((D,), dtype=jnp.float32)

    q_out, k_out = qknorm(q, k, v, q_scale, k_scale)
    jax.block_until_ready((q_out, k_out))
    q_ref, k_ref = qknorm_reference(q, k, v, q_scale, k_scale)
    assert q_out.shape == q_ref.shape and q_out.dtype == q_ref.dtype
    assert k_out.shape == k_ref.shape and k_out.dtype == k_ref.dtype
    assert jnp.allclose(q_out, q_ref, atol=1e-5, rtol=1e-5), "q mismatch (f32)"
    assert jnp.allclose(k_out, k_ref, atol=1e-5, rtol=1e-5), "k mismatch (f32)"

    # bf16 q/k/v: output dtype fused to v.dtype inside the kernel.
    qb, kb, vb = (q.astype(jnp.bfloat16), k.astype(jnp.bfloat16),
                  v.astype(jnp.bfloat16))
    qb_out, kb_out = qknorm(qb, kb, vb, q_scale, k_scale)
    jax.block_until_ready((qb_out, kb_out))
    qb_ref, kb_ref = qknorm_reference(qb, kb, vb, q_scale, k_scale)
    assert qb_out.dtype == vb.dtype and kb_out.dtype == vb.dtype
    assert jnp.allclose(qb_out.astype(jnp.float32), qb_ref.astype(jnp.float32),
                        atol=2e-2, rtol=2e-2), "q mismatch (bf16)"
    assert jnp.allclose(kb_out.astype(jnp.float32), kb_ref.astype(jnp.float32),
                        atol=2e-2, rtol=2e-2), "k mismatch (bf16)"

    # Standalone RMSNorm, lane-full D=128 path + unaligned row count (row padding).
    D2 = 128
    x = jax.random.normal(kq, (3, 5, D2), dtype=jnp.float32)
    s2 = jax.random.normal(kk, (D2,), dtype=jnp.float32) * 0.1 + 1.0
    y = rmsnorm(x, s2)
    jax.block_until_ready(y)
    y_ref = rmsnorm_reference(x, s2)
    assert y.shape == y_ref.shape and y.dtype == y_ref.dtype
    assert jnp.allclose(y, y_ref, atol=1e-5, rtol=1e-5), "rmsnorm mismatch (D=128)"

    print("KERNEL_OK")
</pallas_src>

<mosaic_0001>
module attributes {stable_mosaic.version = 11 : i64} {
  func.func @_rmsnorm_kernel(%arg0: i32, %arg1: memref<16x128xf32, #tpu.memory_space<vmem>>, %arg2: memref<1x128xf32, #tpu.memory_space<vmem>>, %arg3: memref<16x128xf32, #tpu.memory_space<vmem>>) attributes {dimension_semantics = [#tpu.dimension_semantics<parallel>], iteration_bounds = array<i64: 1>, scalar_prefetch = 0 : i64, scratch_operands = 0 : i64, tpu.core_type = #tpu.core_type<tc>, window_params = [{transform_indices = @transform_0, window_bounds = array<i64: 16, 128>}, {pipeline_mode = #tpu.pipeline_mode<synchronous>, transform_indices = @transform_1, window_bounds = array<i64: 1, 128>}, {transform_indices = @transform_2, window_bounds = array<i64: 16, 128>}]} {
    %c0 = arith.constant 0 : index
    %c0_0 = arith.constant 0 : index
    %0 = vector.load %arg1[%c0, %c0_0] : memref<16x128xf32, #tpu.memory_space<vmem>>, vector<16x128xf32>
    %c0_1 = arith.constant 0 : index
    %c0_2 = arith.constant 0 : index
    %1 = vector.load %arg2[%c0_1, %c0_2] : memref<1x128xf32, #tpu.memory_space<vmem>>, vector<1x128xf32>
    %2 = vector.extract_strided_slice %0 {offsets = [0, 0], sizes = [16, 32], strides = [1, 1]} : vector<16x128xf32> to vector<16x32xf32>
    %3 = arith.mulf %2, %2 : vector<16x32xf32>
    %cst = arith.constant dense<0.000000e+00> : vector<16xf32>
    %4 = vector.multi_reduction <add>, %3, %cst [1] : vector<16x32xf32> to vector<16xf32>
    %5 = vector.shape_cast %4 : vector<16xf32> to vector<16x1xf32>
    %cst_3 = arith.constant 3.200000e+01 : f32
    %6 = vector.broadcast %cst_3 : f32 to vector<16x1xf32>
    %7 = arith.divf %5, %6 : vector<16x1xf32>
    %cst_4 = arith.constant 9.99999997E-7 : f32
    %8 = vector.broadcast %cst_4 : f32 to vector<16x1xf32>
    %9 = arith.addf %7, %8 : vector<16x1xf32>
    %10 = math.rsqrt %9 : vector<16x1xf32>
    %11 = vector.broadcast %10 : vector<16x1xf32> to vector<16x32xf32>
    %12 = arith.mulf %2, %11 : vector<16x32xf32>
    %13 = vector.extract_strided_slice %1 {offsets = [0, 0], sizes = [1, 32], strides = [1, 1]} : vector<1x128xf32> to vector<1x32xf32>
    %14 = vector.broadcast %13 : vector<1x32xf32> to vector<16x32xf32>
    %15 = arith.mulf %12, %14 : vector<16x32xf32>
    %c0_5 = arith.constant 0 : index
    %c0_6 = arith.constant 0 : index
    %16 = vector.load %arg3[%c0_5, %c0_6] : memref<16x128xf32, #tpu.memory_space<vmem>>, vector<16x32xf32>
    tpu.vector_store %arg3[%c0_5, %c0_6], %15 {strides = array<i32>} : memref<16x128xf32, #tpu.memory_space<vmem>>, vector<16x32xf32>,
    %17 = vector.extract_strided_slice %0 {offsets = [0, 32], sizes = [16, 32], strides = [1, 1]} : vector<16x128xf32> to vector<16x32xf32>
    %18 = arith.mulf %17, %17 : vector<16x32xf32>
    %cst_7 = arith.constant dense<0.000000e+00> : vector<16xf32>
    %19 = vector.multi_reduction <add>, %18, %cst_7 [1] : vector<16x32xf32> to vector<16xf32>
    %20 = vector.shape_cast %19 : vector<16xf32> to vector<16x1xf32>
    %cst_8 = arith.constant 3.200000e+01 : f32
    %21 = vector.broadcast %cst_8 : f32 to vector<16x1xf32>
    %22 = arith.divf %20, %21 : vector<16x1xf32>
    %cst_9 = arith.constant 9.99999997E-7 : f32
    %23 = vector.broadcast %cst_9 : f32 to vector<16x1xf32>
    %24 = arith.addf %22, %23 : vector<16x1xf32>
    %25 = math.rsqrt %24 : vector<16x1xf32>
    %26 = vector.broadcast %25 : vector<16x1xf32> to vector<16x32xf32>
    %27 = arith.mulf %17, %26 : vector<16x32xf32>
    %28 = vector.extract_strided_slice %1 {offsets = [0, 32], sizes = [1, 32], strides = [1, 1]} : vector<1x128xf32> to vector<1x32xf32>
    %29 = vector.broadcast %28 : vector<1x32xf32> to vector<16x32xf32>
    %30 = arith.mulf %27, %29 : vector<16x32xf32>
    %c0_10 = arith.constant 0 : index
    %c32 = arith.constant 32 : index
    %31 = vector.load %arg3[%c0_10, %c32] : memref<16x128xf32, #tpu.memory_space<vmem>>, vector<16x32xf32>
    tpu.vector_store %arg3[%c0_10, %c32], %30 {strides = array<i32>} : memref<16x128xf32, #tpu.memory_space<vmem>>, vector<16x32xf32>,
    %32 = vector.extract_strided_slice %0 {offsets = [0, 64], sizes = [16, 32], strides = [1, 1]} : vector<16x128xf32> to vector<16x32xf32>
    %33 = arith.mulf %32, %32 : vector<16x32xf32>
    %cst_11 = arith.constant dense<0.000000e+00> : vector<16xf32>
    %34 = vector.multi_reduction <add>, %33, %cst_11 [1] : vector<16x32xf32> to vector<16xf32>
    %35 = vector.shape_cast %34 : vector<16xf32> to vector<16x1xf32>
    %cst_12 = arith.constant 3.200000e+01 : f32
    %36 = vector.broadcast %cst_12 : f32 to vector<16x1xf32>
    %37 = arith.divf %35, %36 : vector<16x1xf32>
    %cst_13 = arith.constant 9.99999997E-7 : f32
    %38 = vector.broadcast %cst_13 : f32 to vector<16x1xf32>
    %39 = arith.addf %37, %38 : vector<16x1xf32>
    %40 = math.rsqrt %39 : vector<16x1xf32>
    %41 = vector.broadcast %40 : vector<16x1xf32> to vector<16x32xf32>
    %42 = arith.mulf %32, %41 : vector<16x32xf32>
    %43 = vector.extract_strided_slice %1 {offsets = [0, 64], sizes = [1, 32], strides = [1, 1]} : vector<1x128xf32> to vector<1x32xf32>
    %44 = vector.broadcast %43 : vector<1x32xf32> to vector<16x32xf32>
    %45 = arith.mulf %42, %44 : vector<16x32xf32>
    %c0_14 = arith.constant 0 : index
    %c64 = arith.constant 64 : index
    %46 = vector.load %arg3[%c0_14, %c64] : memref<16x128xf32, #tpu.memory_space<vmem>>, vector<16x32xf32>
    tpu.vector_store %arg3[%c0_14, %c64], %45 {strides = array<i32>} : memref<16x128xf32, #tpu.memory_space<vmem>>, vector<16x32xf32>,
    %47 = vector.extract_strided_slice %0 {offsets = [0, 96], sizes = [16, 32], strides = [1, 1]} : vector<16x128xf32> to vector<16x32xf32>
    %48 = arith.mulf %47, %47 : vector<16x32xf32>
    %cst_15 = arith.constant dense<0.000000e+00> : vector<16xf32>
    %49 = vector.multi_reduction <add>, %48, %cst_15 [1] : vector<16x32xf32> to vector<16xf32>
    %50 = vector.shape_cast %49 : vector<16xf32> to vector<16x1xf32>
    %cst_16 = arith.constant 3.200000e+01 : f32
    %51 = vector.broadcast %cst_16 : f32 to vector<16x1xf32>
    %52 = arith.divf %50, %51 : vector<16x1xf32>
    %cst_17 = arith.constant 9.99999997E-7 : f32
    %53 = vector.broadcast %cst_17 : f32 to vector<16x1xf32>
    %54 = arith.addf %52, %53 : vector<16x1xf32>
    %55 = math.rsqrt %54 : vector<16x1xf32>
    %56 = vector.broadcast %55 : vector<16x1xf32> to vector<16x32xf32>
    %57 = arith.mulf %47, %56 : vector<16x32xf32>
    %58 = vector.extract_strided_slice %1 {offsets = [0, 96], sizes = [1, 32], strides = [1, 1]} : vector<1x128xf32> to vector<1x32xf32>
    %59 = vector.broadcast %58 : vector<1x32xf32> to vector<16x32xf32>
    %60 = arith.mulf %57, %59 : vector<16x32xf32>
    %c0_18 = arith.constant 0 : index
    %c96 = arith.constant 96 : index
    %61 = vector.load %arg3[%c0_18, %c96] : memref<16x128xf32, #tpu.memory_space<vmem>>, vector<16x32xf32>
    tpu.vector_store %arg3[%c0_18, %c96], %60 {strides = array<i32>} : memref<16x128xf32, #tpu.memory_space<vmem>>, vector<16x32xf32>,
    return
  }
  func.func @transform_0(%arg0: i32) -> (i32, i32) {
    %c0_i32 = arith.constant 0 : i32
    %c0_i32_0 = arith.constant 0 : i32
    return %arg0, %c0_i32 : i32, i32
  }
  func.func @transform_1(%arg0: i32) -> (i32, i32) {
    %c0_i32 = arith.constant 0 : i32
    %c0_i32_0 = arith.constant 0 : i32
    %c0_i32_1 = arith.constant 0 : i32
    return %c0_i32, %c0_i32_0 : i32, i32
  }
  func.func @transform_2(%arg0: i32) -> (i32, i32) {
    %c0_i32 = arith.constant 0 : i32
    %c0_i32_0 = arith.constant 0 : i32
    return %arg0, %c0_i32 : i32, i32
  }
}

</mosaic_0001>

<llo_original>
// kernel: tpu_custom_call.1
$region0: #{tpu_custom_call.1}
  #allocation0 [shape = 'u32[]', space=smem, size = 0x4, offset = 0x4, fixed_abs, tag = 'smem constant byte address 0x4 - core index']
  #allocation1 [shape = 'u32[144,128]{1,0:T(1,128)}', space=vmem, size = 0x12000, scoped, tag = 'internal scratch']
  %s0 = inlined_call_operand.hbm [shape: f32[16,128], index: 0, kind: input, shape index: {}]
  %s1 = inlined_call_operand.vmem [shape: f32[1,128], index: 1, kind: input, shape index: {}]
  %s2 = inlined_call_operand.hbm [shape: f32[16,128], index: 2, kind: output, shape index: {}]
  %s3 = sld [smem:[#allocation0]]
  $region22: #{tpu_custom_call.1} parent=0
    _
  %s5 = ssub.s32 1, %s3
  %s6 = scalar_select 0, %s5, %s3
  $region1: #{tpu_custom_call.1} parent=0
    #allocation2 [shape = 'u8[8192]{0}', space=vmem, size = 0x2000, scoped, tag = 'input window, operand 0, single buffered']
    #allocation3 [shape = 's32[1]{0}', space=sflag, size = 0x4, scoped, tag = 'scoped memory for tpu_custom_call.1']
    #allocation4 [shape = 's32[1]{0}', space=sflag, size = 0x4, scoped, tag = 'scoped memory for tpu_custom_call.1']
    #allocation5 [shape = 'u8[8192]{0}', space=vmem, size = 0x2000, scoped, tag = 'output window, operand 0, single buffered']
    %7 = vsyncpa [#allocation3], 0
    %8 = vsyncpa [#allocation4], 0
    // Predicated region
    $region2: #{tpu_custom_call.1} parent=1 // pred_check
      _
    $region3: #{tpu_custom_call.1} parent=1 // pred_check_branch
      %10 = sbr.rel (0) target = $region5
    $region4: #{tpu_custom_call.1} parent=1 // pred_region
      %s12 = ssub.s32 256, 256
      %13 = vsyncadd [#allocation3], %s12
      %s14 = sshll.u32 [#allocation2], 4
      %s15 = int_to_ptr.vmem [resolvable:$true] %s14
      %20 = dma.hbm_to_vmem [thread:$0]  %s0, 256, %s15, [#allocation3], 128, 128, 8
    $region5: #{tpu_custom_call.1} parent=1 // pred_fallthru
      _
    // Predicated region
    $region6: #{tpu_custom_call.1} parent=1 // pred_check
      _
    $region7: #{tpu_custom_call.1} parent=1 // pred_check_branch
      %22 = sbr.rel (0) target = $region9
    $region8: #{tpu_custom_call.1} parent=1 // pred_region
      _
    $region9: #{tpu_custom_call.1} parent=1 // pred_fallthru
      _
    // Predicated region
    $region10: #{tpu_custom_call.1} parent=1 // pred_check
      _
    $region11: #{tpu_custom_call.1} parent=1 // pred_check_branch
      %24 = sbr.rel (0) target = $region13
    $region12: #{tpu_custom_call.1} parent=1 // pred_region
      %25 = dma.done [#allocation3], 256
    $region13: #{tpu_custom_call.1} parent=1 // pred_fallthru
      _
    %v26 = vld [vmem:[#allocation2] sm:$0xff]
    %v27 = vld [vmem:[#allocation2 + $0x8] sm:$0xff]
    %v28 = vld [vmem:[%s1] sm:$0x1]
    %v29 = vmul.f32 %v26, %v26
    %v30 = vmul.f32 %v27, %v27
    %vm31 = vcmask 261120
    %v32 = vsel %vm31, %v29, 0.0
    %33 = vadd.xlane.f32.xlu0 %v32
    %v34 = vpop.xlane.xlu0 %33
    %v35 = vsel %vm31, %v30, 0.0
    %36 = vadd.xlane.f32.xlu0 %v35
    %v37 = vpop.xlane.xlu0 %36
    %v38 = vrcp.pop 32.0
    %v39 = vmul.f32 %v34, %v38
    %v40 = vmul.f32 %v37, %v38
    %v41 = vadd.f32 %v39, 1e-06
    %v42 = vadd.f32 %v40, 1e-06
    %v43 = vrsqrt.pop %v41
    %v44 = vrsqrt.pop %v42
    %v45 = vmul.f32 %v26, %v43
    %v46 = vmul.f32 %v27, %v44
    %v48 = vlaneseq
    %v49 = vshrl.u32 %v48, 7
    %v50 = vsub.s32 0, %v49
    %v51 = vrot.slane %v28, %v50
    %v53 = vmul.f32 %v45, %v51
    %v54 = vmul.f32 %v46, %v51
    %55 = vst.msk [vmem:[#allocation5] sm:$0xff] %vm31, %v53
    %56 = vst.msk [vmem:[#allocation5 + $0x8] sm:$0xff] %vm31, %v54
    %59 = vrot.lane.b32.xlu0 %v29, 96
    %v60 = vpop.permute.xlu0 %59
    %61 = vrot.lane.b32.xlu0 %v30, 96
    %v62 = vpop.permute.xlu0 %61
    %v65 = vsel %vm31, %v60, 0.0
    %66 = vadd.xlane.f32.xlu0 %v65
    %v67 = vpop.xlane.xlu0 %66
    %v68 = vsel %vm31, %v62, 0.0
    %69 = vadd.xlane.f32.xlu0 %v68
    %v70 = vpop.xlane.xlu0 %69
    %v71 = vmul.f32 %v67, %v38
    %v72 = vmul.f32 %v70, %v38
    %v73 = vadd.f32 %v71, 1e-06
    %v74 = vadd.f32 %v72, 1e-06
    %v75 = vrsqrt.pop %v73
    %v76 = vrsqrt.pop %v74
    %v77 = vmul.f32 %v26, %v75
    %v78 = vmul.f32 %v27, %v76
    %v79 = vmul.f32 %v77, %v51
    %v80 = vmul.f32 %v78, %v51
    %vm81 = vcmask 523520
    %82 = vst.msk [vmem:[#allocation5] sm:$0xff] %vm81, %v79
    %83 = vst.msk [vmem:[#allocation5 + $0x8] sm:$0xff] %vm81, %v80
    %84 = vrot.lane.b32.xlu0 %v29, 64
    %v85 = vpop.permute.xlu0 %84
    %86 = vrot.lane.b32.xlu0 %v30, 64
    %v87 = vpop.permute.xlu0 %86
    %v90 = vsel %vm31, %v85, 0.0
    %91 = vadd.xlane.f32.xlu0 %v90
    %v92 = vpop.xlane.xlu0 %91
    %v93 = vsel %vm31, %v87, 0.0
    %94 = vadd.xlane.f32.xlu0 %v93
    %v95 = vpop.xlane.xlu0 %94
    %v96 = vmul.f32 %v92, %v38
    %v97 = vmul.f32 %v95, %v38
    %v98 = vadd.f32 %v96, 1e-06
    %v99 = vadd.f32 %v97, 1e-06
    %v100 = vrsqrt.pop %v98
    %v101 = vrsqrt.pop %v99
    %v102 = vmul.f32 %v26, %v100
    %v103 = vmul.f32 %v27, %v101
    %v104 = vmul.f32 %v102, %v51
    %v105 = vmul.f32 %v103, %v51
    %vm106 = vcmask 785920
    %107 = vst.msk [vmem:[#allocation5] sm:$0xff] %vm106, %v104
    %108 = vst.msk [vmem:[#allocation5 + $0x8] sm:$0xff] %vm106, %v105
    %109 = vrot.lane.b32.xlu0 %v29, 32
    %v110 = vpop.permute.xlu0 %109
    %111 = vrot.lane.b32.xlu0 %v30, 32
    %v112 = vpop.permute.xlu0 %111
    %v115 = vsel %vm31, %v110, 0.0
    %116 = vadd.xlane.f32.xlu0 %v115
    %v117 = vpop.xlane.xlu0 %116
    %v118 = vsel %vm31, %v112, 0.0
    %119 = vadd.xlane.f32.xlu0 %v118
    %v120 = vpop.xlane.xlu0 %119
    %v121 = vmul.f32 %v117, %v38
    %v122 = vmul.f32 %v120, %v38
    %v123 = vadd.f32 %v121, 1e-06
    %v124 = vadd.f32 %v122, 1e-06
    %v125 = vrsqrt.pop %v123
    %v126 = vrsqrt.pop %v124
    %v127 = vmul.f32 %v26, %v125
    %v128 = vmul.f32 %v27, %v126
    %v129 = vmul.f32 %v127, %v51
    %v130 = vmul.f32 %v128, %v51
    %vm131 = vcmask 1048320
    %132 = vst.msk [vmem:[#allocation5] sm:$0xff] %vm131, %v129
    %133 = vst.msk [vmem:[#allocation5 + $0x8] sm:$0xff] %vm131, %v130
    // Predicated region
    $region14: #{tpu_custom_call.1} parent=1 // pred_check
      _
    $region15: #{tpu_custom_call.1} parent=1 // pred_check_branch
      %135 = sbr.rel (0) target = $region17
    $region16: #{tpu_custom_call.1} parent=1 // pred_region
      %s137 = ssub.s32 256, 256
      %138 = vsyncadd [#allocation4], %s137
      %s139 = sshll.u32 [#allocation5], 4
      %s140 = int_to_ptr.vmem [resolvable:$true] %s139
      %145 = dma.vmem_to_hbm [thread:$0]  %s140, 256, %s2, [#allocation4], 128, 128, 8
    $region17: #{tpu_custom_call.1} parent=1 // pred_fallthru
      _
    // Predicated region
    $region18: #{tpu_custom_call.1} parent=1 // pred_check
      _
    $region19: #{tpu_custom_call.1} parent=1 // pred_check_branch
      %147 = sbr.rel (0) target = $region21
    $region20: #{tpu_custom_call.1} parent=1 // pred_region
      %148 = dma.done [#allocation4], 256
    $region21: #{tpu_custom_call.1} parent=1 // pred_fallthru
      _
    %149 = vsyncpa [#allocation3], 1
    %150 = vsyncpa [#allocation4], 1

</llo_original>
